<compile_context>
chip_gen: v6e
topology: v6e:2x2x1
jax: 0.10.0
libtpu: 0.0.40
codegen_flags: <defaults>
</compile_context>

<pallas_src>
import jax
import jax.numpy as jnp
from jax.experimental import pallas as pl
from jax.experimental.pallas import tpu as pltpu

D_IN, HID, ENC_OUT, DEC_OUT = 3, 32, 5, 10

LANES = 128        # lane width of each row-chunk (multiple of 128 -> unmasked vst)
SUBLANE = 8        # sublane granularity
TM_TARGET = 1024   # row-chunks per grid step -> 1024*128 = 131072 rows/step (~6.5 MiB/step)


def _round_up(x, m):
    return (x + m - 1) // m * m


def collapsed_affine_kernel(p_ref, x_ref, out_ref):
    """Lane-dense collapsed affine map.

    p_ref   : SMEM (3*DEC_OUT + DEC_OUT,)  -- [W_eff.T flattened ; b_eff] scalars.
    x_ref   : VMEM (3, TM, LANES)          -- [notes; onsets; durations], rows packed
                                              on sublanes x lanes (fully dense vregs).
    out_ref : VMEM (DEC_OUT, TM, LANES)    -- out[j] = w0j*n + w1j*o + w2j*d + bj.
    """
    n = x_ref[0]
    o = x_ref[1]
    d = x_ref[2]
    for j in range(DEC_OUT):                       # unrolled: 10 dense (TM, 128) slabs
        out_ref[j] = (n * p_ref[3 * j]
                      + o * p_ref[3 * j + 1]
                      + d * p_ref[3 * j + 2]
                      + p_ref[3 * DEC_OUT + j])


def collapse_params(params):
    """Fold FF1 -> FF2 -> FF3 -> decoder (all linear, no activations) into one affine map."""
    w1, b1, w2, b2, w3, b3, wd, bd = params
    w_eff = w1 @ w2 @ w3 @ wd                      # [D_IN, DEC_OUT]
    b_eff = ((b1 @ w2 + b2) @ w3 + b3) @ wd + bd   # [DEC_OUT]
    return w_eff.astype(jnp.float32), b_eff.astype(jnp.float32)


def init_params(key):
    ks = jax.random.split(key, 8)

    def linear(kw, kb, fan_in, fan_out):
        bound = 1.0 / (fan_in ** 0.5)
        w = jax.random.uniform(kw, (fan_in, fan_out), jnp.float32, -bound, bound)
        b = jax.random.uniform(kb, (fan_out,), jnp.float32, -bound, bound)
        return w, b

    w1, b1 = linear(ks[0], ks[1], D_IN, HID)          # FF1: 3 -> 32
    w2, b2 = linear(ks[2], ks[3], HID, HID)           # FF2: 32 -> 32
    w3, b3 = linear(ks[4], ks[5], HID, ENC_OUT)       # FF3: 32 -> 5
    wd, bd = linear(ks[6], ks[7], ENC_OUT, DEC_OUT)   # decoder: 5 -> 10
    return (w1, b1, w2, b2, w3, b3, wd, bd)


def windowed_forward(notes, onsets, durations, x_lengths, edge_list, params,
                     fingers=None, *, tm=TM_TARGET):
    # x_lengths / edge_list / fingers accepted for signature parity; the
    # reference forward never uses them numerically.
    del x_lengths, edge_list, fingers
    B, S = notes.shape
    N = B * S

    w_eff, b_eff = collapse_params(params)
    # Scalar operand table for SMEM: [W_eff.T flattened (3*10) ; b_eff (10)].
    p_flat = jnp.concatenate([w_eff.T.reshape(-1), b_eff]).astype(jnp.float32)

    # Rows-on-lanes layout: flatten rows, pad only to the 8x128 layout granularity.
    n_pad = _round_up(max(N, 1), SUBLANE * LANES)
    rows = n_pad // LANES                             # multiple of 8

    flat = jnp.stack([notes.reshape(-1), onsets.reshape(-1),
                      durations.reshape(-1)]).astype(jnp.float32)      # (3, N)
    if n_pad != N:
        flat = jnp.pad(flat, ((0, 0), (0, n_pad - N)))
    x = flat.reshape(D_IN, rows, LANES)               # fused input stream

    tm = min(tm, rows)
    grid = (pl.cdiv(rows, tm),)

    out = pl.pallas_call(
        collapsed_affine_kernel,
        out_shape=jax.ShapeDtypeStruct((DEC_OUT, rows, LANES), jnp.float32),
        grid=grid,
        in_specs=[
            # 40 scalars resident in SMEM for the whole grid (no DMA pipeline).
            pl.BlockSpec(memory_space=pltpu.MemorySpace.SMEM),
            # fused notes/onsets/durations stream, blocked over the row-chunk dim.
            pl.BlockSpec((D_IN, tm, LANES), lambda i: (0, i, 0)),
        ],
        out_specs=pl.BlockSpec((DEC_OUT, tm, LANES), lambda i: (0, i, 0)),
        compiler_params=pltpu.CompilerParams(
            dimension_semantics=("parallel",),
            vmem_limit_bytes=32 * 1024 * 1024,
        ),
        cost_estimate=pl.CostEstimate(
            flops=6 * n_pad * DEC_OUT,                 # 3 mul + 3 add per output elem
            transcendentals=0,
            bytes_accessed=4 * (D_IN * n_pad + DEC_OUT * n_pad + int(p_flat.size)),
        ),
    )(p_flat, x)

    # (DEC_OUT, n_pad) -> drop padding -> (N, DEC_OUT) -> (B, S, DEC_OUT).
    out = out.reshape(DEC_OUT, n_pad)[:, :N]
    return out.T.reshape(B, S, DEC_OUT)


def reference_forward(notes, onsets, durations, params):
    # 4-stage (uncollapsed) reference, matching the PyTorch module semantics.
    w1, b1, w2, b2, w3, b3, wd, bd = params
    x = jnp.stack([notes, onsets, durations], axis=-1).astype(jnp.float32)
    x = x @ w1 + b1
    x = x @ w2 + b2
    x = x @ w3 + b3
    return x @ wd + bd


if __name__ == "__main__":
    key = jax.random.PRNGKey(0)
    k_notes, k_onsets, k_durs, k_params = jax.random.split(key, 4)

    B, S = 2, 8
    notes = jax.random.randint(k_notes, (B, S), 0, 88).astype(jnp.float32)
    onsets = jax.random.uniform(k_onsets, (B, S), jnp.float32, 0.0, 4.0)
    durations = jax.random.uniform(k_durs, (B, S), jnp.float32, 0.1, 1.0)
    x_lengths = jnp.full((B,), S, dtype=jnp.int32)
    edge_list = None

    params = init_params(k_params)

    logits = windowed_forward(notes, onsets, durations, x_lengths, edge_list, params)
    logits = jax.block_until_ready(logits)

    ref = reference_forward(notes, onsets, durations, params)
    assert logits.shape == (B, S, DEC_OUT), logits.shape
    # Collapsing the linear chain changes f32 summation order slightly; tolerance
    # accounts for that (outputs are O(10)).
    assert jnp.allclose(logits, ref, atol=2e-3, rtol=2e-4), \
        float(jnp.max(jnp.abs(logits - ref)))

    print("KERNEL_OK")
</pallas_src>

<mosaic_0001>
module attributes {stable_mosaic.version = 11 : i64} {
  func.func @collapsed_affine_kernel(%arg0: i32, %arg1: memref<40xf32, #tpu.memory_space<smem>>, %arg2: memref<3x8x128xf32, #tpu.memory_space<vmem>>, %arg3: memref<10x8x128xf32, #tpu.memory_space<vmem>>) attributes {dimension_semantics = [#tpu.dimension_semantics<parallel>], iteration_bounds = array<i64: 1>, scalar_prefetch = 0 : i64, scratch_operands = 0 : i64, tpu.core_type = #tpu.core_type<tc>, window_params = [{transform_indices = @transform_0, window_bounds = array<i64: 40>}, {transform_indices = @transform_1, window_bounds = array<i64: 3, 8, 128>}, {transform_indices = @transform_2, window_bounds = array<i64: 10, 8, 128>}]} {
    %c0 = arith.constant 0 : index
    %c0_0 = arith.constant 0 : index
    %c0_1 = arith.constant 0 : index
    %0 = vector.load %arg2[%c0, %c0_0, %c0_1] : memref<3x8x128xf32, #tpu.memory_space<vmem>>, vector<1x8x128xf32>
    %1 = vector.shape_cast %0 : vector<1x8x128xf32> to vector<8x128xf32>
    %c1 = arith.constant 1 : index
    %c0_2 = arith.constant 0 : index
    %c0_3 = arith.constant 0 : index
    %2 = vector.load %arg2[%c1, %c0_2, %c0_3] : memref<3x8x128xf32, #tpu.memory_space<vmem>>, vector<1x8x128xf32>
    %3 = vector.shape_cast %2 : vector<1x8x128xf32> to vector<8x128xf32>
    %c2 = arith.constant 2 : index
    %c0_4 = arith.constant 0 : index
    %c0_5 = arith.constant 0 : index
    %4 = vector.load %arg2[%c2, %c0_4, %c0_5] : memref<3x8x128xf32, #tpu.memory_space<vmem>>, vector<1x8x128xf32>
    %5 = vector.shape_cast %4 : vector<1x8x128xf32> to vector<8x128xf32>
    %c0_6 = arith.constant 0 : index
    %6 = memref.load %arg1[%c0_6] : memref<40xf32, #tpu.memory_space<smem>>
    %7 = vector.broadcast %6 : f32 to vector<8x128xf32>
    %8 = arith.mulf %1, %7 : vector<8x128xf32>
    %c1_7 = arith.constant 1 : index
    %9 = memref.load %arg1[%c1_7] : memref<40xf32, #tpu.memory_space<smem>>
    %10 = vector.broadcast %9 : f32 to vector<8x128xf32>
    %11 = arith.mulf %3, %10 : vector<8x128xf32>
    %12 = arith.addf %8, %11 : vector<8x128xf32>
    %c2_8 = arith.constant 2 : index
    %13 = memref.load %arg1[%c2_8] : memref<40xf32, #tpu.memory_space<smem>>
    %14 = vector.broadcast %13 : f32 to vector<8x128xf32>
    %15 = arith.mulf %5, %14 : vector<8x128xf32>
    %16 = arith.addf %12, %15 : vector<8x128xf32>
    %c30 = arith.constant 30 : index
    %17 = memref.load %arg1[%c30] : memref<40xf32, #tpu.memory_space<smem>>
    %18 = vector.broadcast %17 : f32 to vector<8x128xf32>
    %19 = arith.addf %16, %18 : vector<8x128xf32>
    %c0_9 = arith.constant 0 : index
    %c0_10 = arith.constant 0 : index
    %c0_11 = arith.constant 0 : index
    %20 = vector.load %arg3[%c0_9, %c0_10, %c0_11] : memref<10x8x128xf32, #tpu.memory_space<vmem>>, vector<1x8x128xf32>
    %21 = vector.shape_cast %20 : vector<1x8x128xf32> to vector<8x128xf32>
    %22 = vector.shape_cast %19 : vector<8x128xf32> to vector<1x8x128xf32>
    tpu.vector_store %arg3[%c0_9, %c0_10, %c0_11], %22 {strides = array<i32>} : memref<10x8x128xf32, #tpu.memory_space<vmem>>, vector<1x8x128xf32>,
    %c3 = arith.constant 3 : index
    %23 = memref.load %arg1[%c3] : memref<40xf32, #tpu.memory_space<smem>>
    %24 = vector.broadcast %23 : f32 to vector<8x128xf32>
    %25 = arith.mulf %1, %24 : vector<8x128xf32>
    %c4 = arith.constant 4 : index
    %26 = memref.load %arg1[%c4] : memref<40xf32, #tpu.memory_space<smem>>
    %27 = vector.broadcast %26 : f32 to vector<8x128xf32>
    %28 = arith.mulf %3, %27 : vector<8x128xf32>
    %29 = arith.addf %25, %28 : vector<8x128xf32>
    %c5 = arith.constant 5 : index
    %30 = memref.load %arg1[%c5] : memref<40xf32, #tpu.memory_space<smem>>
    %31 = vector.broadcast %30 : f32 to vector<8x128xf32>
    %32 = arith.mulf %5, %31 : vector<8x128xf32>
    %33 = arith.addf %29, %32 : vector<8x128xf32>
    %c31 = arith.constant 31 : index
    %34 = memref.load %arg1[%c31] : memref<40xf32, #tpu.memory_space<smem>>
    %35 = vector.broadcast %34 : f32 to vector<8x128xf32>
    %36 = arith.addf %33, %35 : vector<8x128xf32>
    %c1_12 = arith.constant 1 : index
    %c0_13 = arith.constant 0 : index
    %c0_14 = arith.constant 0 : index
    %37 = vector.load %arg3[%c1_12, %c0_13, %c0_14] : memref<10x8x128xf32, #tpu.memory_space<vmem>>, vector<1x8x128xf32>
    %38 = vector.shape_cast %37 : vector<1x8x128xf32> to vector<8x128xf32>
    %39 = vector.shape_cast %36 : vector<8x128xf32> to vector<1x8x128xf32>
    tpu.vector_store %arg3[%c1_12, %c0_13, %c0_14], %39 {strides = array<i32>} : memref<10x8x128xf32, #tpu.memory_space<vmem>>, vector<1x8x128xf32>,
    %c6 = arith.constant 6 : index
    %40 = memref.load %arg1[%c6] : memref<40xf32, #tpu.memory_space<smem>>
    %41 = vector.broadcast %40 : f32 to vector<8x128xf32>
    %42 = arith.mulf %1, %41 : vector<8x128xf32>
    %c7 = arith.constant 7 : index
    %43 = memref.load %arg1[%c7] : memref<40xf32, #tpu.memory_space<smem>>
    %44 = vector.broadcast %43 : f32 to vector<8x128xf32>
    %45 = arith.mulf %3, %44 : vector<8x128xf32>
    %46 = arith.addf %42, %45 : vector<8x128xf32>
    %c8 = arith.constant 8 : index
    %47 = memref.load %arg1[%c8] : memref<40xf32, #tpu.memory_space<smem>>
    %48 = vector.broadcast %47 : f32 to vector<8x128xf32>
    %49 = arith.mulf %5, %48 : vector<8x128xf32>
    %50 = arith.addf %46, %49 : vector<8x128xf32>
    %c32 = arith.constant 32 : index
    %51 = memref.load %arg1[%c32] : memref<40xf32, #tpu.memory_space<smem>>
    %52 = vector.broadcast %51 : f32 to vector<8x128xf32>
    %53 = arith.addf %50, %52 : vector<8x128xf32>
    %c2_15 = arith.constant 2 : index
    %c0_16 = arith.constant 0 : index
    %c0_17 = arith.constant 0 : index
    %54 = vector.load %arg3[%c2_15, %c0_16, %c0_17] : memref<10x8x128xf32, #tpu.memory_space<vmem>>, vector<1x8x128xf32>
    %55 = vector.shape_cast %54 : vector<1x8x128xf32> to vector<8x128xf32>
    %56 = vector.shape_cast %53 : vector<8x128xf32> to vector<1x8x128xf32>
    tpu.vector_store %arg3[%c2_15, %c0_16, %c0_17], %56 {strides = array<i32>} : memref<10x8x128xf32, #tpu.memory_space<vmem>>, vector<1x8x128xf32>,
    %c9 = arith.constant 9 : index
    %57 = memref.load %arg1[%c9] : memref<40xf32, #tpu.memory_space<smem>>
    %58 = vector.broadcast %57 : f32 to vector<8x128xf32>
    %59 = arith.mulf %1, %58 : vector<8x128xf32>
    %c10 = arith.constant 10 : index
    %60 = memref.load %arg1[%c10] : memref<40xf32, #tpu.memory_space<smem>>
    %61 = vector.broadcast %60 : f32 to vector<8x128xf32>
    %62 = arith.mulf %3, %61 : vector<8x128xf32>
    %63 = arith.addf %59, %62 : vector<8x128xf32>
    %c11 = arith.constant 11 : index
    %64 = memref.load %arg1[%c11] : memref<40xf32, #tpu.memory_space<smem>>
    %65 = vector.broadcast %64 : f32 to vector<8x128xf32>
    %66 = arith.mulf %5, %65 : vector<8x128xf32>
    %67 = arith.addf %63, %66 : vector<8x128xf32>
    %c33 = arith.constant 33 : index
    %68 = memref.load %arg1[%c33] : memref<40xf32, #tpu.memory_space<smem>>
    %69 = vector.broadcast %68 : f32 to vector<8x128xf32>
    %70 = arith.addf %67, %69 : vector<8x128xf32>
    %c3_18 = arith.constant 3 : index
    %c0_19 = arith.constant 0 : index
    %c0_20 = arith.constant 0 : index
    %71 = vector.load %arg3[%c3_18, %c0_19, %c0_20] : memref<10x8x128xf32, #tpu.memory_space<vmem>>, vector<1x8x128xf32>
    %72 = vector.shape_cast %71 : vector<1x8x128xf32> to vector<8x128xf32>
    %73 = vector.shape_cast %70 : vector<8x128xf32> to vector<1x8x128xf32>
    tpu.vector_store %arg3[%c3_18, %c0_19, %c0_20], %73 {strides = array<i32>} : memref<10x8x128xf32, #tpu.memory_space<vmem>>, vector<1x8x128xf32>,
    %c12 = arith.constant 12 : index
    %74 = memref.load %arg1[%c12] : memref<40xf32, #tpu.memory_space<smem>>
    %75 = vector.broadcast %74 : f32 to vector<8x128xf32>
    %76 = arith.mulf %1, %75 : vector<8x128xf32>
    %c13 = arith.constant 13 : index
    %77 = memref.load %arg1[%c13] : memref<40xf32, #tpu.memory_space<smem>>
    %78 = vector.broadcast %77 : f32 to vector<8x128xf32>
    %79 = arith.mulf %3, %78 : vector<8x128xf32>
    %80 = arith.addf %76, %79 : vector<8x128xf32>
    %c14 = arith.constant 14 : index
    %81 = memref.load %arg1[%c14] : memref<40xf32, #tpu.memory_space<smem>>
    %82 = vector.broadcast %81 : f32 to vector<8x128xf32>
    %83 = arith.mulf %5, %82 : vector<8x128xf32>
    %84 = arith.addf %80, %83 : vector<8x128xf32>
    %c34 = arith.constant 34 : index
    %85 = memref.load %arg1[%c34] : memref<40xf32, #tpu.memory_space<smem>>
    %86 = vector.broadcast %85 : f32 to vector<8x128xf32>
    %87 = arith.addf %84, %86 : vector<8x128xf32>
    %c4_21 = arith.constant 4 : index
    %c0_22 = arith.constant 0 : index
    %c0_23 = arith.constant 0 : index
    %88 = vector.load %arg3[%c4_21, %c0_22, %c0_23] : memref<10x8x128xf32, #tpu.memory_space<vmem>>, vector<1x8x128xf32>
    %89 = vector.shape_cast %88 : vector<1x8x128xf32> to vector<8x128xf32>
    %90 = vector.shape_cast %87 : vector<8x128xf32> to vector<1x8x128xf32>
    tpu.vector_store %arg3[%c4_21, %c0_22, %c0_23], %90 {strides = array<i32>} : memref<10x8x128xf32, #tpu.memory_space<vmem>>, vector<1x8x128xf32>,
    %c15 = arith.constant 15 : index
    %91 = memref.load %arg1[%c15] : memref<40xf32, #tpu.memory_space<smem>>
    %92 = vector.broadcast %91 : f32 to vector<8x128xf32>
    %93 = arith.mulf %1, %92 : vector<8x128xf32>
    %c16 = arith.constant 16 : index
    %94 = memref.load %arg1[%c16] : memref<40xf32, #tpu.memory_space<smem>>
    %95 = vector.broadcast %94 : f32 to vector<8x128xf32>
    %96 = arith.mulf %3, %95 : vector<8x128xf32>
    %97 = arith.addf %93, %96 : vector<8x128xf32>
    %c17 = arith.constant 17 : index
    %98 = memref.load %arg1[%c17] : memref<40xf32, #tpu.memory_space<smem>>
    %99 = vector.broadcast %98 : f32 to vector<8x128xf32>
    %100 = arith.mulf %5, %99 : vector<8x128xf32>
    %101 = arith.addf %97, %100 : vector<8x128xf32>
    %c35 = arith.constant 35 : index
    %102 = memref.load %arg1[%c35] : memref<40xf32, #tpu.memory_space<smem>>
    %103 = vector.broadcast %102 : f32 to vector<8x128xf32>
    %104 = arith.addf %101, %103 : vector<8x128xf32>
    %c5_24 = arith.constant 5 : index
    %c0_25 = arith.constant 0 : index
    %c0_26 = arith.constant 0 : index
    %105 = vector.load %arg3[%c5_24, %c0_25, %c0_26] : memref<10x8x128xf32, #tpu.memory_space<vmem>>, vector<1x8x128xf32>
    %106 = vector.shape_cast %105 : vector<1x8x128xf32> to vector<8x128xf32>
    %107 = vector.shape_cast %104 : vector<8x128xf32> to vector<1x8x128xf32>
    tpu.vector_store %arg3[%c5_24, %c0_25, %c0_26], %107 {strides = array<i32>} : memref<10x8x128xf32, #tpu.memory_space<vmem>>, vector<1x8x128xf32>,
    %c18 = arith.constant 18 : index
    %108 = memref.load %arg1[%c18] : memref<40xf32, #tpu.memory_space<smem>>
    %109 = vector.broadcast %108 : f32 to vector<8x128xf32>
    %110 = arith.mulf %1, %109 : vector<8x128xf32>
    %c19 = arith.constant 19 : index
    %111 = memref.load %arg1[%c19] : memref<40xf32, #tpu.memory_space<smem>>
    %112 = vector.broadcast %111 : f32 to vector<8x128xf32>
    %113 = arith.mulf %3, %112 : vector<8x128xf32>
    %114 = arith.addf %110, %113 : vector<8x128xf32>
    %c20 = arith.constant 20 : index
    %115 = memref.load %arg1[%c20] : memref<40xf32, #tpu.memory_space<smem>>
    %116 = vector.broadcast %115 : f32 to vector<8x128xf32>
    %117 = arith.mulf %5, %116 : vector<8x128xf32>
    %118 = arith.addf %114, %117 : vector<8x128xf32>
    %c36 = arith.constant 36 : index
    %119 = memref.load %arg1[%c36] : memref<40xf32, #tpu.memory_space<smem>>
    %120 = vector.broadcast %119 : f32 to vector<8x128xf32>
    %121 = arith.addf %118, %120 : vector<8x128xf32>
    %c6_27 = arith.constant 6 : index
    %c0_28 = arith.constant 0 : index
    %c0_29 = arith.constant 0 : index
    %122 = vector.load %arg3[%c6_27, %c0_28, %c0_29] : memref<10x8x128xf32, #tpu.memory_space<vmem>>, vector<1x8x128xf32>
    %123 = vector.shape_cast %122 : vector<1x8x128xf32> to vector<8x128xf32>
    %124 = vector.shape_cast %121 : vector<8x128xf32> to vector<1x8x128xf32>
    tpu.vector_store %arg3[%c6_27, %c0_28, %c0_29], %124 {strides = array<i32>} : memref<10x8x128xf32, #tpu.memory_space<vmem>>, vector<1x8x128xf32>,
    %c21 = arith.constant 21 : index
    %125 = memref.load %arg1[%c21] : memref<40xf32, #tpu.memory_space<smem>>
    %126 = vector.broadcast %125 : f32 to vector<8x128xf32>
    %127 = arith.mulf %1, %126 : vector<8x128xf32>
    %c22 = arith.constant 22 : index
    %128 = memref.load %arg1[%c22] : memref<40xf32, #tpu.memory_space<smem>>
    %129 = vector.broadcast %128 : f32 to vector<8x128xf32>
    %130 = arith.mulf %3, %129 : vector<8x128xf32>
    %131 = arith.addf %127, %130 : vector<8x128xf32>
    %c23 = arith.constant 23 : index
    %132 = memref.load %arg1[%c23] : memref<40xf32, #tpu.memory_space<smem>>
    %133 = vector.broadcast %132 : f32 to vector<8x128xf32>
    %134 = arith.mulf %5, %133 : vector<8x128xf32>
    %135 = arith.addf %131, %134 : vector<8x128xf32>
    %c37 = arith.constant 37 : index
    %136 = memref.load %arg1[%c37] : memref<40xf32, #tpu.memory_space<smem>>
    %137 = vector.broadcast %136 : f32 to vector<8x128xf32>
    %138 = arith.addf %135, %137 : vector<8x128xf32>
    %c7_30 = arith.constant 7 : index
    %c0_31 = arith.constant 0 : index
    %c0_32 = arith.constant 0 : index
    %139 = vector.load %arg3[%c7_30, %c0_31, %c0_32] : memref<10x8x128xf32, #tpu.memory_space<vmem>>, vector<1x8x128xf32>
    %140 = vector.shape_cast %139 : vector<1x8x128xf32> to vector<8x128xf32>
    %141 = vector.shape_cast %138 : vector<8x128xf32> to vector<1x8x128xf32>
    tpu.vector_store %arg3[%c7_30, %c0_31, %c0_32], %141 {strides = array<i32>} : memref<10x8x128xf32, #tpu.memory_space<vmem>>, vector<1x8x128xf32>,
    %c24 = arith.constant 24 : index
    %142 = memref.load %arg1[%c24] : memref<40xf32, #tpu.memory_space<smem>>
    %143 = vector.broadcast %142 : f32 to vector<8x128xf32>
    %144 = arith.mulf %1, %143 : vector<8x128xf32>
    %c25 = arith.constant 25 : index
    %145 = memref.load %arg1[%c25] : memref<40xf32, #tpu.memory_space<smem>>
    %146 = vector.broadcast %145 : f32 to vector<8x128xf32>
    %147 = arith.mulf %3, %146 : vector<8x128xf32>
    %148 = arith.addf %144, %147 : vector<8x128xf32>
    %c26 = arith.constant 26 : index
    %149 = memref.load %arg1[%c26] : memref<40xf32, #tpu.memory_space<smem>>
    %150 = vector.broadcast %149 : f32 to vector<8x128xf32>
    %151 = arith.mulf %5, %150 : vector<8x128xf32>
    %152 = arith.addf %148, %151 : vector<8x128xf32>
    %c38 = arith.constant 38 : index
    %153 = memref.load %arg1[%c38] : memref<40xf32, #tpu.memory_space<smem>>
    %154 = vector.broadcast %153 : f32 to vector<8x128xf32>
    %155 = arith.addf %152, %154 : vector<8x128xf32>
    %c8_33 = arith.constant 8 : index
    %c0_34 = arith.constant 0 : index
    %c0_35 = arith.constant 0 : index
    %156 = vector.load %arg3[%c8_33, %c0_34, %c0_35] : memref<10x8x128xf32, #tpu.memory_space<vmem>>, vector<1x8x128xf32>
    %157 = vector.shape_cast %156 : vector<1x8x128xf32> to vector<8x128xf32>
    %158 = vector.shape_cast %155 : vector<8x128xf32> to vector<1x8x128xf32>
    tpu.vector_store %arg3[%c8_33, %c0_34, %c0_35], %158 {strides = array<i32>} : memref<10x8x128xf32, #tpu.memory_space<vmem>>, vector<1x8x128xf32>,
    %c27 = arith.constant 27 : index
    %159 = memref.load %arg1[%c27] : memref<40xf32, #tpu.memory_space<smem>>
    %160 = vector.broadcast %159 : f32 to vector<8x128xf32>
    %161 = arith.mulf %1, %160 : vector<8x128xf32>
    %c28 = arith.constant 28 : index
    %162 = memref.load %arg1[%c28] : memref<40xf32, #tpu.memory_space<smem>>
    %163 = vector.broadcast %162 : f32 to vector<8x128xf32>
    %164 = arith.mulf %3, %163 : vector<8x128xf32>
    %165 = arith.addf %161, %164 : vector<8x128xf32>
    %c29 = arith.constant 29 : index
    %166 = memref.load %arg1[%c29] : memref<40xf32, #tpu.memory_space<smem>>
    %167 = vector.broadcast %166 : f32 to vector<8x128xf32>
    %168 = arith.mulf %5, %167 : vector<8x128xf32>
    %169 = arith.addf %165, %168 : vector<8x128xf32>
    %c39 = arith.constant 39 : index
    %170 = memref.load %arg1[%c39] : memref<40xf32, #tpu.memory_space<smem>>
    %171 = vector.broadcast %170 : f32 to vector<8x128xf32>
    %172 = arith.addf %169, %171 : vector<8x128xf32>
    %c9_36 = arith.constant 9 : index
    %c0_37 = arith.constant 0 : index
    %c0_38 = arith.constant 0 : index
    %173 = vector.load %arg3[%c9_36, %c0_37, %c0_38] : memref<10x8x128xf32, #tpu.memory_space<vmem>>, vector<1x8x128xf32>
    %174 = vector.shape_cast %173 : vector<1x8x128xf32> to vector<8x128xf32>
    %175 = vector.shape_cast %172 : vector<8x128xf32> to vector<1x8x128xf32>
    tpu.vector_store %arg3[%c9_36, %c0_37, %c0_38], %175 {strides = array<i32>} : memref<10x8x128xf32, #tpu.memory_space<vmem>>, vector<1x8x128xf32>,
    return
  }
  func.func @transform_0(%arg0: i32) -> i32 {
    %c0_i32 = arith.constant 0 : i32
    %c0_i32_0 = arith.constant 0 : i32
    return %c0_i32 : i32
  }
  func.func @transform_1(%arg0: i32) -> (i32, i32, i32) {
    %c0_i32 = arith.constant 0 : i32
    %c0_i32_0 = arith.constant 0 : i32
    %c0_i32_1 = arith.constant 0 : i32
    return %c0_i32, %arg0, %c0_i32_0 : i32, i32, i32
  }
  func.func @transform_2(%arg0: i32) -> (i32, i32, i32) {
    %c0_i32 = arith.constant 0 : i32
    %c0_i32_0 = arith.constant 0 : i32
    %c0_i32_1 = arith.constant 0 : i32
    return %c0_i32, %arg0, %c0_i32_0 : i32, i32, i32
  }
}

</mosaic_0001>

<llo_original>
// kernel: tpu_custom_call.1
$region0: #{tpu_custom_call.1}
  #allocation0 [shape = 'u32[]', space=smem, size = 0x4, offset = 0x4, fixed_abs, tag = 'smem constant byte address 0x4 - core index']
  #allocation1 [shape = 'u32[144,128]{1,0:T(1,128)}', space=vmem, size = 0x12000, scoped, tag = 'internal scratch']
  %s0 = inlined_call_operand.hbm [shape: f32[40], index: 0, kind: input, shape index: {}]
  %s1 = inlined_call_operand.hbm [shape: f32[3,8,128], index: 1, kind: input, shape index: {}]
  %s2 = inlined_call_operand.hbm [shape: f32[10,8,128], index: 2, kind: output, shape index: {}]
  %s3 = sld [smem:[#allocation0]]
  $region26: #{tpu_custom_call.1} parent=0
    _
  %s5 = ssub.s32 1, %s3
  %s6 = scalar_select 0, %s5, %s3
  $region1: #{tpu_custom_call.1} parent=0
    #allocation2 [shape = 'u8[512]{0}', space=smem, size = 0x200, scoped, tag = 'input window, operand 0, single buffered']
    #allocation3 [shape = 's32[1]{0}', space=sflag, size = 0x4, scoped, tag = 'scoped memory for tpu_custom_call.1']
    #allocation4 [shape = 's32[1]{0}', space=sflag, size = 0x4, scoped, tag = 'scoped memory for tpu_custom_call.1']
    #allocation5 [shape = 's32[1]{0}', space=sflag, size = 0x4, scoped, tag = 'scoped memory for tpu_custom_call.1']
    #allocation6 [shape = 'u8[12288]{0}', space=vmem, size = 0x3000, scoped, tag = 'input window, operand 1, single buffered']
    #allocation7 [shape = 'u8[40960]{0}', space=vmem, size = 0xa000, scoped, tag = 'output window, operand 0, single buffered']
    %7 = vsyncpa [#allocation5], 0
    %8 = vsyncpa [#allocation3], 0
    %9 = vsyncpa [#allocation4], 0
    // Predicated region
    $region2: #{tpu_custom_call.1} parent=1 // pred_check
      _
    $region3: #{tpu_custom_call.1} parent=1 // pred_check_branch
      %11 = sbr.rel (0) target = $region5
    $region4: #{tpu_custom_call.1} parent=1 // pred_region
      %s13 = ssub.s32 16, 16
      %14 = vsyncadd [#allocation5], %s13
      %17 = dma.hbm_to_smem %s0, 16, [#allocation2], [#allocation5]
    $region5: #{tpu_custom_call.1} parent=1 // pred_fallthru
      _
    // Predicated region
    $region6: #{tpu_custom_call.1} parent=1 // pred_check
      _
    $region7: #{tpu_custom_call.1} parent=1 // pred_check_branch
      %19 = sbr.rel (0) target = $region9
    $region8: #{tpu_custom_call.1} parent=1 // pred_region
      %s21 = ssub.s32 384, 384
      %22 = vsyncadd [#allocation3], %s21
      %s23 = sshll.u32 [#allocation6], 4
      %s24 = int_to_ptr.vmem [resolvable:$true] %s23
      %29 = dma.hbm_to_vmem [thread:$0]  %s1, 384, %s24, [#allocation3], 128, 128, 8
    $region9: #{tpu_custom_call.1} parent=1 // pred_fallthru
      _
    // Predicated region
    $region10: #{tpu_custom_call.1} parent=1 // pred_check
      _
    $region11: #{tpu_custom_call.1} parent=1 // pred_check_branch
      %31 = sbr.rel (0) target = $region13
    $region12: #{tpu_custom_call.1} parent=1 // pred_region
      %32 = dma.done [#allocation5], 16
    $region13: #{tpu_custom_call.1} parent=1 // pred_fallthru
      _
    // Predicated region
    $region14: #{tpu_custom_call.1} parent=1 // pred_check
      _
    $region15: #{tpu_custom_call.1} parent=1 // pred_check_branch
      %34 = sbr.rel (0) target = $region17
    $region16: #{tpu_custom_call.1} parent=1 // pred_region
      %35 = dma.done [#allocation3], 384
    $region17: #{tpu_custom_call.1} parent=1 // pred_fallthru
      _
    %36 = sfence
    %v37 = vld [vmem:[#allocation6] sm:$0xff]
    %s38 = scalar_lea.vmem [#allocation6], 8
    %v39 = vld [vmem:[%s38] sm:$0xff]
    %s40 = scalar_lea.vmem [#allocation6], 16
    %v41 = vld [vmem:[%s40] sm:$0xff]
    %s42 = sld [smem:[#allocation2]]
    %v43 = vstv %s42
    %v44 = vmul.f32 %v37, %v43
    %s45 = sld [smem:[#allocation2 + $0x1]]
    %v46 = vstv %s45
    %v47 = vmul.f32 %v39, %v46
    %v48 = vadd.f32 %v44, %v47
    %s49 = sld [smem:[#allocation2 + $0x2]]
    %v50 = vstv %s49
    %v51 = vmul.f32 %v41, %v50
    %v52 = vadd.f32 %v48, %v51
    %s53 = sld [smem:[#allocation2 + $0x1e]]
    %v54 = vstv %s53
    %v55 = vadd.f32 %v52, %v54
    %56 = vst [vmem:[#allocation7] sm:$0xff] %v55
    %s57 = sld [smem:[#allocation2 + $0x3]]
    %v58 = vstv %s57
    %v59 = vmul.f32 %v37, %v58
    %s60 = sld [smem:[#allocation2 + $0x4]]
    %v61 = vstv %s60
    %v62 = vmul.f32 %v39, %v61
    %v63 = vadd.f32 %v59, %v62
    %s64 = sld [smem:[#allocation2 + $0x5]]
    %v65 = vstv %s64
    %v66 = vmul.f32 %v41, %v65
    %v67 = vadd.f32 %v63, %v66
    %s68 = sld [smem:[#allocation2 + $0x1f]]
    %v69 = vstv %s68
    %v70 = vadd.f32 %v67, %v69
    %s71 = scalar_lea.vmem [#allocation7], 8
    %72 = vst [vmem:[%s71] sm:$0xff] %v70
    %s73 = sld [smem:[#allocation2 + $0x6]]
    %v74 = vstv %s73
    %v75 = vmul.f32 %v37, %v74
    %s76 = sld [smem:[#allocation2 + $0x7]]
    %v77 = vstv %s76
    %v78 = vmul.f32 %v39, %v77
    %v79 = vadd.f32 %v75, %v78
    %s80 = sld [smem:[#allocation2 + $0x8]]
    %v81 = vstv %s80
    %v82 = vmul.f32 %v41, %v81
    %v83 = vadd.f32 %v79, %v82
    %s84 = sld [smem:[#allocation2 + $0x20]]
    %v85 = vstv %s84
    %v86 = vadd.f32 %v83, %v85
    %s87 = scalar_lea.vmem [#allocation7], 16
    %88 = vst [vmem:[%s87] sm:$0xff] %v86
    %s89 = sld [smem:[#allocation2 + $0x9]]
    %v90 = vstv %s89
    %v91 = vmul.f32 %v37, %v90
    %s92 = sld [smem:[#allocation2 + $0xa]]
    %v93 = vstv %s92
    %v94 = vmul.f32 %v39, %v93
    %v95 = vadd.f32 %v91, %v94
    %s96 = sld [smem:[#allocation2 + $0xb]]
    %v97 = vstv %s96
    %v98 = vmul.f32 %v41, %v97
    %v99 = vadd.f32 %v95, %v98
    %s100 = sld [smem:[#allocation2 + $0x21]]
    %v101 = vstv %s100
    %v102 = vadd.f32 %v99, %v101
    %s103 = scalar_lea.vmem [#allocation7], 24
    %104 = vst [vmem:[%s103] sm:$0xff] %v102
    %s105 = sld [smem:[#allocation2 + $0xc]]
    %v106 = vstv %s105
    %v107 = vmul.f32 %v37, %v106
    %s108 = sld [smem:[#allocation2 + $0xd]]
    %v109 = vstv %s108
    %v110 = vmul.f32 %v39, %v109
    %v111 = vadd.f32 %v107, %v110
    %s112 = sld [smem:[#allocation2 + $0xe]]
    %v113 = vstv %s112
    %v114 = vmul.f32 %v41, %v113
    %v115 = vadd.f32 %v111, %v114
    %s116 = sld [smem:[#allocation2 + $0x22]]
    %v117 = vstv %s116
    %v118 = vadd.f32 %v115, %v117
    %s119 = scalar_lea.vmem [#allocation7], 32
    %120 = vst [vmem:[%s119] sm:$0xff] %v118
    %s121 = sld [smem:[#allocation2 + $0xf]]
    %v122 = vstv %s121
    %v123 = vmul.f32 %v37, %v122
    %s124 = sld [smem:[#allocation2 + $0x10]]
    %v125 = vstv %s124
    %v126 = vmul.f32 %v39, %v125
    %v127 = vadd.f32 %v123, %v126
    %s128 = sld [smem:[#allocation2 + $0x11]]
    %v129 = vstv %s128
    %v130 = vmul.f32 %v41, %v129
    %v131 = vadd.f32 %v127, %v130
    %s132 = sld [smem:[#allocation2 + $0x23]]
    %v133 = vstv %s132
    %v134 = vadd.f32 %v131, %v133
    %s135 = scalar_lea.vmem [#allocation7], 40
    %136 = vst [vmem:[%s135] sm:$0xff] %v134
    %s137 = sld [smem:[#allocation2 + $0x12]]
    %v138 = vstv %s137
    %v139 = vmul.f32 %v37, %v138
    %s140 = sld [smem:[#allocation2 + $0x13]]
    %v141 = vstv %s140
    %v142 = vmul.f32 %v39, %v141
    %v143 = vadd.f32 %v139, %v142
    %s144 = sld [smem:[#allocation2 + $0x14]]
    %v145 = vstv %s144
    %v146 = vmul.f32 %v41, %v145
    %v147 = vadd.f32 %v143, %v146
    %s148 = sld [smem:[#allocation2 + $0x24]]
    %v149 = vstv %s148
    %v150 = vadd.f32 %v147, %v149
    %s151 = scalar_lea.vmem [#allocation7], 48
    %152 = vst [vmem:[%s151] sm:$0xff] %v150
    %s153 = sld [smem:[#allocation2 + $0x15]]
    %v154 = vstv %s153
    %v155 = vmul.f32 %v37, %v154
    %s156 = sld [smem:[#allocation2 + $0x16]]
    %v157 = vstv %s156
    %v158 = vmul.f32 %v39, %v157
    %v159 = vadd.f32 %v155, %v158
    %s160 = sld [smem:[#allocation2 + $0x17]]
    %v161 = vstv %s160
    %v162 = vmul.f32 %v41, %v161
    %v163 = vadd.f32 %v159, %v162
    %s164 = sld [smem:[#allocation2 + $0x25]]
    %v165 = vstv %s164
    %v166 = vadd.f32 %v163, %v165
    %s167 = scalar_lea.vmem [#allocation7], 56
    %168 = vst [vmem:[%s167] sm:$0xff] %v166
    %s169 = sld [smem:[#allocation2 + $0x18]]
    %v170 = vstv %s169
    %v171 = vmul.f32 %v37, %v170
    %s172 = sld [smem:[#allocation2 + $0x19]]
    %v173 = vstv %s172
    %v174 = vmul.f32 %v39, %v173
    %v175 = vadd.f32 %v171, %v174
    %s176 = sld [smem:[#allocation2 + $0x1a]]
    %v177 = vstv %s176
    %v178 = vmul.f32 %v41, %v177
    %v179 = vadd.f32 %v175, %v178
    %s180 = sld [smem:[#allocation2 + $0x26]]
    %v181 = vstv %s180
    %v182 = vadd.f32 %v179, %v181
    %s183 = scalar_lea.vmem [#allocation7], 64
    %184 = vst [vmem:[%s183] sm:$0xff] %v182
    %s185 = sld [smem:[#allocation2 + $0x1b]]
    %v186 = vstv %s185
    %v187 = vmul.f32 %v37, %v186
    %s188 = sld [smem:[#allocation2 + $0x1c]]
    %v189 = vstv %s188
    %v190 = vmul.f32 %v39, %v189
    %v191 = vadd.f32 %v187, %v190
    %s192 = sld [smem:[#allocation2 + $0x1d]]
    %v193 = vstv %s192
    %v194 = vmul.f32 %v41, %v193
    %v195 = vadd.f32 %v191, %v194
    %s196 = sld [smem:[#allocation2 + $0x27]]
    %v197 = vstv %s196
    %v198 = vadd.f32 %v195, %v197
    %s199 = scalar_lea.vmem [#allocation7], 72
    %200 = vst [vmem:[%s199] sm:$0xff] %v198
    // Predicated region
    $region18: #{tpu_custom_call.1} parent=1 // pred_check
      _
    $region19: #{tpu_custom_call.1} parent=1 // pred_check_branch
      %202 = sbr.rel (0) target = $region21
    $region20: #{tpu_custom_call.1} parent=1 // pred_region
      %s204 = ssub.s32 1280, 1280
      %205 = vsyncadd [#allocation4], %s204
      %s206 = sshll.u32 [#allocation7], 4
      %s207 = int_to_ptr.vmem [resolvable:$true] %s206
      %212 = dma.vmem_to_hbm [thread:$0]  %s207, 1280, %s2, [#allocation4], 128, 128, 8
    $region21: #{tpu_custom_call.1} parent=1 // pred_fallthru
      _
    // Predicated region
    $region22: #{tpu_custom_call.1} parent=1 // pred_check
      _
    $region23: #{tpu_custom_call.1} parent=1 // pred_check_branch
      %214 = sbr.rel (0) target = $region25
    $region24: #{tpu_custom_call.1} parent=1 // pred_region
      %215 = dma.done [#allocation4], 1280
    $region25: #{tpu_custom_call.1} parent=1 // pred_fallthru
      _
    %216 = vsyncpa [#allocation3], 1
    %217 = vsyncpa [#allocation4], 1
    %218 = vsyncpa [#allocation5], 1

</llo_original>
